<compile_context>
chip_gen: v6e
topology: v6e:2x2x1
jax: 0.10.0
libtpu: 0.0.40
codegen_flags: <defaults>
</compile_context>

<pallas_src>
import functools

import jax
import jax.numpy as jnp
from jax.experimental import pallas as pl
from jax.experimental.pallas import tpu as pltpu

LEAKY_SLOPE = 0.01   # PyTorch nn.LeakyReLU default
BN_EPS = 1e-5        # PyTorch nn.BatchNorm1d default
LANE = 128


def _round_up(n, m=LANE):
    return ((n + m - 1) // m) * m


def _pad2(a, rows, cols):
    r, c = a.shape
    if r == rows and c == cols:
        return a
    return jnp.pad(a, ((0, rows - r), (0, cols - c)))


def _fused_mlp_kernel(x_ref, wf_ref, bf_ref, gf_ref, betaf_ref,
                      wm_ref, bm_ref, gm_ref, betam_ref,
                      wl_ref, bl_ref, gl_ref, betal_ref,
                      o_ref, *, n_mid, bn_hidden, bn_last):
    """Entire MLP forward: everything (weights + activations) resident in VMEM."""
    inv_b = jnp.float32(1.0 / x_ref.shape[0])

    def leaky(h):
        return jnp.where(h >= 0, h, LEAKY_SLOPE * h)

    def batchnorm(h, gamma, beta):
        # One-pass batch stats (biased variance), f32.  Fold gamma into a single
        # per-feature scale and the mean into the shift, so the batch x H slab
        # gets exactly one fused multiply-add pass.
        m = jnp.sum(h, axis=0, keepdims=True) * inv_b
        ms = jnp.sum(h * h, axis=0, keepdims=True) * inv_b
        var = jnp.maximum(ms - m * m, 0.0)
        scale = gamma * jax.lax.rsqrt(var + BN_EPS)   # EUP rsqrt, (1, H)
        shift = beta - m * scale                      # (1, H)
        return h * scale + shift

    # Layer 0 : Linear -> LeakyReLU -> [BN]
    h = jnp.dot(x_ref[...], wf_ref[...], preferred_element_type=jnp.float32)
    h = leaky(h + bf_ref[...])
    if bn_hidden:
        h = batchnorm(h, gf_ref[...], betaf_ref[...])

    # Middle layers (stacked weights, statically unrolled ping-pong in VMEM)
    for l in range(n_mid):
        h = jnp.dot(h, wm_ref[l], preferred_element_type=jnp.float32)
        h = leaky(h + bm_ref[l])
        if bn_hidden:
            h = batchnorm(h, gm_ref[l], betam_ref[l])

    # Last layer : Linear -> [BN]   (no LeakyReLU)
    h = jnp.dot(h, wl_ref[...], preferred_element_type=jnp.float32)
    if bn_last:
        # Bias omitted: a per-feature constant shift is cancelled by the BN mean.
        h = batchnorm(h, gl_ref[...], betal_ref[...])
    else:
        h = h + bl_ref[...]

    o_ref[...] = h.astype(o_ref.dtype)


def init_augmented_mlp_params(key, insize=60, hiddensize=512, outsize=None,
                              layer_nb=8):
    """Deterministic parameter init matching the AugmentedMLP layer shapes."""
    if outsize is None:
        outsize = insize
    params = []
    for k in range(layer_nb):
        din = insize if k == 0 else hiddensize
        dout = outsize if k == layer_nb - 1 else hiddensize
        key, kw, kb = jax.random.split(key, 3)
        bound = 1.0 / jnp.sqrt(din)
        w = jax.random.uniform(kw, (din, dout), jnp.float32, -bound, bound)
        b = jax.random.uniform(kb, (dout,), jnp.float32, -bound, bound)
        gamma = jnp.ones((dout,), jnp.float32)   # BatchNorm affine weight
        beta = jnp.zeros((dout,), jnp.float32)   # BatchNorm affine bias
        params.append((w, b, gamma, beta))
    return params


def augmented_mlp_forward(x, params, *, batch_norm=True, bn_output=True):
    """Whole stack in a single fused Pallas kernel (lane-padded to 128)."""
    layer_nb = len(params)
    assert layer_nb >= 2, "fused kernel expects at least 2 layers"
    batch, insize = x.shape
    hiddensize = params[0][0].shape[1]
    outsize = params[-1][0].shape[1]

    din_p = _round_up(insize)
    h_p = _round_up(hiddensize)
    dout_p = _round_up(outsize)

    # ---- pad everything to lane-dense widths (zeros keep numerics exact) ----
    x_p = jnp.pad(x, ((0, 0), (0, din_p - insize)))

    w0, b0, g0, be0 = params[0]
    wf = _pad2(w0, din_p, h_p)
    bf = _pad2(b0.reshape(1, -1), 1, h_p)
    gf = _pad2(g0.reshape(1, -1), 1, h_p)
    betaf = _pad2(be0.reshape(1, -1), 1, h_p)

    n_mid = layer_nb - 2
    if n_mid > 0:
        mids = params[1:layer_nb - 1]
        wm = jnp.stack([_pad2(w, h_p, h_p) for (w, _, _, _) in mids])
        bm = jnp.stack([_pad2(b.reshape(1, -1), 1, h_p) for (_, b, _, _) in mids])
        gm = jnp.stack([_pad2(g.reshape(1, -1), 1, h_p) for (_, _, g, _) in mids])
        betam = jnp.stack([_pad2(be.reshape(1, -1), 1, h_p) for (_, _, _, be) in mids])
    else:  # dummy (unused) stack so the kernel signature is uniform
        wm = jnp.zeros((1, h_p, h_p), jnp.float32)
        bm = jnp.zeros((1, 1, h_p), jnp.float32)
        gm = jnp.zeros((1, 1, h_p), jnp.float32)
        betam = jnp.zeros((1, 1, h_p), jnp.float32)

    wL, bL, gL, beL = params[-1]
    wl = _pad2(wL, h_p, dout_p)
    bl = _pad2(bL.reshape(1, -1), 1, dout_p)
    gl = _pad2(gL.reshape(1, -1), 1, dout_p)
    betal = _pad2(beL.reshape(1, -1), 1, dout_p)

    ins = [x_p, wf, bf, gf, betaf, wm, bm, gm, betam, wl, bl, gl, betal]

    # ---- VMEM budget: actual footprint (+ headroom), never the full 64 MiB ----
    footprint = sum(int(a.size) * a.dtype.itemsize for a in ins)
    footprint += batch * dout_p * 4          # output
    footprint += 2 * batch * h_p * 4         # live activation intermediates
    vmem_limit = int(min(max(2 * footprint + (4 << 20), 16 << 20), 48 << 20))

    kernel = functools.partial(
        _fused_mlp_kernel,
        n_mid=n_mid,
        bn_hidden=batch_norm,
        bn_last=batch_norm and bn_output)

    vspec = pl.BlockSpec(memory_space=pltpu.MemorySpace.VMEM)
    out_p = pl.pallas_call(
        kernel,
        out_shape=jax.ShapeDtypeStruct((batch, dout_p), jnp.float32),
        in_specs=[vspec] * len(ins),
        out_specs=vspec,
        compiler_params=pltpu.CompilerParams(vmem_limit_bytes=vmem_limit),
    )(*ins)

    return out_p[:, :outsize]


def _reference_forward(x, params, *, batch_norm=True, bn_output=True):
    """Pure-JAX reference mirroring the PyTorch forward (training-mode BN)."""
    layer_nb = len(params)
    for k, (w, b, gamma, beta) in enumerate(params):
        is_last = (k == layer_nb - 1)
        h = x @ w + b
        if not is_last:
            h = jnp.where(h >= 0, h, LEAKY_SLOPE * h)
        if batch_norm and (bn_output if is_last else True):
            mean = jnp.mean(h, axis=0, keepdims=True)
            var = jnp.mean((h - mean) ** 2, axis=0, keepdims=True)
            h = (h - mean) / jnp.sqrt(var + BN_EPS) * gamma + beta
        x = h
    return x


if __name__ == "__main__":
    # Small, module-consistent shapes; insize=60 / hidden=96 exercise the
    # 128-lane padding path.
    key = jax.random.PRNGKey(0)
    kx, kp = jax.random.split(key)

    batch, insize, hiddensize, layer_nb = 16, 60, 96, 4
    x = jax.random.normal(kx, (batch, insize), jnp.float32)
    params = init_augmented_mlp_params(
        kp, insize=insize, hiddensize=hiddensize, outsize=None,
        layer_nb=layer_nb)

    # Default configuration: BN everywhere (incl. output).
    out = augmented_mlp_forward(x, params, batch_norm=True, bn_output=True)
    out = jax.block_until_ready(out)
    ref = _reference_forward(x, params, batch_norm=True, bn_output=True)
    assert out.shape == ref.shape == (batch, insize), out.shape
    assert jnp.allclose(out, ref, atol=5e-4, rtol=5e-4), (
        "mismatch (bn_output=True), max abs diff = %e"
        % float(jnp.max(jnp.abs(out - ref))))

    # Last-layer bias path (no BN on the output).
    out2 = jax.block_until_ready(
        augmented_mlp_forward(x, params, batch_norm=True, bn_output=False))
    ref2 = _reference_forward(x, params, batch_norm=True, bn_output=False)
    assert jnp.allclose(out2, ref2, atol=5e-4, rtol=5e-4), "mismatch (bn_output=False)"

    # No-BatchNorm path.
    out3 = jax.block_until_ready(
        augmented_mlp_forward(x, params, batch_norm=False))
    ref3 = _reference_forward(x, params, batch_norm=False)
    assert jnp.allclose(out3, ref3, atol=5e-4, rtol=5e-4), "mismatch (batch_norm=False)"

    print("KERNEL_OK")
</pallas_src>

<mosaic_0001>
module attributes {stable_mosaic.version = 11 : i64} {
  func.func @_fused_mlp_kernel(%arg0: memref<16x128xf32, #tpu.memory_space<vmem>>, %arg1: memref<128x128xf32, #tpu.memory_space<vmem>>, %arg2: memref<1x128xf32, #tpu.memory_space<vmem>>, %arg3: memref<1x128xf32, #tpu.memory_space<vmem>>, %arg4: memref<1x128xf32, #tpu.memory_space<vmem>>, %arg5: memref<2x128x128xf32, #tpu.memory_space<vmem>>, %arg6: memref<2x1x128xf32, #tpu.memory_space<vmem>>, %arg7: memref<2x1x128xf32, #tpu.memory_space<vmem>>, %arg8: memref<2x1x128xf32, #tpu.memory_space<vmem>>, %arg9: memref<128x128xf32, #tpu.memory_space<vmem>>, %arg10: memref<1x128xf32, #tpu.memory_space<vmem>>, %arg11: memref<1x128xf32, #tpu.memory_space<vmem>>, %arg12: memref<1x128xf32, #tpu.memory_space<vmem>>, %arg13: memref<16x128xf32, #tpu.memory_space<vmem>>) attributes {dimension_semantics = [], scalar_prefetch = 0 : i64, scratch_operands = 0 : i64, tpu.core_type = #tpu.core_type<tc>} {
    %c0 = arith.constant 0 : index
    %c0_0 = arith.constant 0 : index
    %0 = vector.load %arg0[%c0, %c0_0] : memref<16x128xf32, #tpu.memory_space<vmem>>, vector<16x128xf32>
    %c0_1 = arith.constant 0 : index
    %c0_2 = arith.constant 0 : index
    %1 = vector.load %arg1[%c0_1, %c0_2] : memref<128x128xf32, #tpu.memory_space<vmem>>, vector<128x128xf32>
    %cst = arith.constant dense<0.000000e+00> : vector<16x128xf32>
    %2 = tpu.matmul %0, %1, %cst {dimension_numbers = #tpu.dot_dimension_numbers<[1], [0], [0], [1], [0, 0, 1, 1], [], []>} : vector<16x128xf32>, vector<128x128xf32>, vector<16x128xf32> -> vector<16x128xf32>
    %c0_3 = arith.constant 0 : index
    %c0_4 = arith.constant 0 : index
    %3 = vector.load %arg2[%c0_3, %c0_4] : memref<1x128xf32, #tpu.memory_space<vmem>>, vector<1x128xf32>
    %4 = vector.broadcast %3 : vector<1x128xf32> to vector<16x128xf32>
    %5 = arith.addf %2, %4 : vector<16x128xf32>
    %cst_5 = arith.constant 0.000000e+00 : f32
    %6 = vector.broadcast %cst_5 : f32 to vector<16x128xf32>
    %7 = arith.cmpf oge, %5, %6 : vector<16x128xf32>
    %cst_6 = arith.constant 0.00999999977 : f32
    %8 = vector.broadcast %cst_6 : f32 to vector<16x128xf32>
    %9 = arith.mulf %8, %5 : vector<16x128xf32>
    %10 = arith.select %7, %5, %9 : vector<16x128xi1>, vector<16x128xf32>
    %c0_7 = arith.constant 0 : index
    %c0_8 = arith.constant 0 : index
    %11 = vector.load %arg3[%c0_7, %c0_8] : memref<1x128xf32, #tpu.memory_space<vmem>>, vector<1x128xf32>
    %c0_9 = arith.constant 0 : index
    %c0_10 = arith.constant 0 : index
    %12 = vector.load %arg4[%c0_9, %c0_10] : memref<1x128xf32, #tpu.memory_space<vmem>>, vector<1x128xf32>
    %cst_11 = arith.constant dense<0.000000e+00> : vector<128xf32>
    %13 = vector.multi_reduction <add>, %10, %cst_11 [0] : vector<16x128xf32> to vector<128xf32>
    %14 = vector.shape_cast %13 : vector<128xf32> to vector<1x128xf32>
    %cst_12 = arith.constant 6.250000e-02 : f32
    %15 = vector.broadcast %cst_12 : f32 to vector<1x128xf32>
    %16 = arith.mulf %14, %15 : vector<1x128xf32>
    %17 = arith.mulf %10, %10 : vector<16x128xf32>
    %cst_13 = arith.constant dense<0.000000e+00> : vector<128xf32>
    %18 = vector.multi_reduction <add>, %17, %cst_13 [0] : vector<16x128xf32> to vector<128xf32>
    %19 = vector.shape_cast %18 : vector<128xf32> to vector<1x128xf32>
    %cst_14 = arith.constant 6.250000e-02 : f32
    %20 = vector.broadcast %cst_14 : f32 to vector<1x128xf32>
    %21 = arith.mulf %19, %20 : vector<1x128xf32>
    %22 = arith.mulf %16, %16 : vector<1x128xf32>
    %23 = arith.subf %21, %22 : vector<1x128xf32>
    %cst_15 = arith.constant 0.000000e+00 : f32
    %24 = vector.broadcast %cst_15 : f32 to vector<1x128xf32>
    %25 = arith.maximumf %23, %24 : vector<1x128xf32>
    %cst_16 = arith.constant 9.99999974E-6 : f32
    %26 = vector.broadcast %cst_16 : f32 to vector<1x128xf32>
    %27 = arith.addf %25, %26 : vector<1x128xf32>
    %28 = math.rsqrt %27 : vector<1x128xf32>
    %29 = arith.mulf %11, %28 : vector<1x128xf32>
    %30 = arith.mulf %16, %29 : vector<1x128xf32>
    %31 = arith.subf %12, %30 : vector<1x128xf32>
    %32 = vector.broadcast %29 : vector<1x128xf32> to vector<16x128xf32>
    %33 = arith.mulf %10, %32 : vector<16x128xf32>
    %34 = vector.broadcast %31 : vector<1x128xf32> to vector<16x128xf32>
    %35 = arith.addf %33, %34 : vector<16x128xf32>
    %c0_17 = arith.constant 0 : index
    %c0_18 = arith.constant 0 : index
    %c0_19 = arith.constant 0 : index
    %36 = vector.load %arg5[%c0_17, %c0_18, %c0_19] : memref<2x128x128xf32, #tpu.memory_space<vmem>>, vector<1x128x128xf32>
    %37 = vector.shape_cast %36 : vector<1x128x128xf32> to vector<128x128xf32>
    %cst_20 = arith.constant dense<0.000000e+00> : vector<16x128xf32>
    %38 = tpu.matmul %35, %37, %cst_20 {dimension_numbers = #tpu.dot_dimension_numbers<[1], [0], [0], [1], [0, 0, 1, 1], [], []>} : vector<16x128xf32>, vector<128x128xf32>, vector<16x128xf32> -> vector<16x128xf32>
    %c0_21 = arith.constant 0 : index
    %c0_22 = arith.constant 0 : index
    %c0_23 = arith.constant 0 : index
    %39 = vector.load %arg6[%c0_21, %c0_22, %c0_23] : memref<2x1x128xf32, #tpu.memory_space<vmem>>, vector<1x1x128xf32>
    %40 = vector.shape_cast %39 : vector<1x1x128xf32> to vector<1x128xf32>
    %41 = vector.broadcast %40 : vector<1x128xf32> to vector<16x128xf32>
    %42 = arith.addf %38, %41 : vector<16x128xf32>
    %cst_24 = arith.constant 0.000000e+00 : f32
    %43 = vector.broadcast %cst_24 : f32 to vector<16x128xf32>
    %44 = arith.cmpf oge, %42, %43 : vector<16x128xf32>
    %cst_25 = arith.constant 0.00999999977 : f32
    %45 = vector.broadcast %cst_25 : f32 to vector<16x128xf32>
    %46 = arith.mulf %45, %42 : vector<16x128xf32>
    %47 = arith.select %44, %42, %46 : vector<16x128xi1>, vector<16x128xf32>
    %c0_26 = arith.constant 0 : index
    %c0_27 = arith.constant 0 : index
    %c0_28 = arith.constant 0 : index
    %48 = vector.load %arg7[%c0_26, %c0_27, %c0_28] : memref<2x1x128xf32, #tpu.memory_space<vmem>>, vector<1x1x128xf32>
    %49 = vector.shape_cast %48 : vector<1x1x128xf32> to vector<1x128xf32>
    %c0_29 = arith.constant 0 : index
    %c0_30 = arith.constant 0 : index
    %c0_31 = arith.constant 0 : index
    %50 = vector.load %arg8[%c0_29, %c0_30, %c0_31] : memref<2x1x128xf32, #tpu.memory_space<vmem>>, vector<1x1x128xf32>
    %51 = vector.shape_cast %50 : vector<1x1x128xf32> to vector<1x128xf32>
    %cst_32 = arith.constant dense<0.000000e+00> : vector<128xf32>
    %52 = vector.multi_reduction <add>, %47, %cst_32 [0] : vector<16x128xf32> to vector<128xf32>
    %53 = vector.shape_cast %52 : vector<128xf32> to vector<1x128xf32>
    %cst_33 = arith.constant 6.250000e-02 : f32
    %54 = vector.broadcast %cst_33 : f32 to vector<1x128xf32>
    %55 = arith.mulf %53, %54 : vector<1x128xf32>
    %56 = arith.mulf %47, %47 : vector<16x128xf32>
    %cst_34 = arith.constant dense<0.000000e+00> : vector<128xf32>
    %57 = vector.multi_reduction <add>, %56, %cst_34 [0] : vector<16x128xf32> to vector<128xf32>
    %58 = vector.shape_cast %57 : vector<128xf32> to vector<1x128xf32>
    %cst_35 = arith.constant 6.250000e-02 : f32
    %59 = vector.broadcast %cst_35 : f32 to vector<1x128xf32>
    %60 = arith.mulf %58, %59 : vector<1x128xf32>
    %61 = arith.mulf %55, %55 : vector<1x128xf32>
    %62 = arith.subf %60, %61 : vector<1x128xf32>
    %cst_36 = arith.constant 0.000000e+00 : f32
    %63 = vector.broadcast %cst_36 : f32 to vector<1x128xf32>
    %64 = arith.maximumf %62, %63 : vector<1x128xf32>
    %cst_37 = arith.constant 9.99999974E-6 : f32
    %65 = vector.broadcast %cst_37 : f32 to vector<1x128xf32>
    %66 = arith.addf %64, %65 : vector<1x128xf32>
    %67 = math.rsqrt %66 : vector<1x128xf32>
    %68 = arith.mulf %49, %67 : vector<1x128xf32>
    %69 = arith.mulf %55, %68 : vector<1x128xf32>
    %70 = arith.subf %51, %69 : vector<1x128xf32>
    %71 = vector.broadcast %68 : vector<1x128xf32> to vector<16x128xf32>
    %72 = arith.mulf %47, %71 : vector<16x128xf32>
    %73 = vector.broadcast %70 : vector<1x128xf32> to vector<16x128xf32>
    %74 = arith.addf %72, %73 : vector<16x128xf32>
    %c1 = arith.constant 1 : index
    %c0_38 = arith.constant 0 : index
    %c0_39 = arith.constant 0 : index
    %75 = vector.load %arg5[%c1, %c0_38, %c0_39] : memref<2x128x128xf32, #tpu.memory_space<vmem>>, vector<1x128x128xf32>
    %76 = vector.shape_cast %75 : vector<1x128x128xf32> to vector<128x128xf32>
    %cst_40 = arith.constant dense<0.000000e+00> : vector<16x128xf32>
    %77 = tpu.matmul %74, %76, %cst_40 {dimension_numbers = #tpu.dot_dimension_numbers<[1], [0], [0], [1], [0, 0, 1, 1], [], []>} : vector<16x128xf32>, vector<128x128xf32>, vector<16x128xf32> -> vector<16x128xf32>
    %c1_41 = arith.constant 1 : index
    %c0_42 = arith.constant 0 : index
    %c0_43 = arith.constant 0 : index
    %78 = vector.load %arg6[%c1_41, %c0_42, %c0_43] : memref<2x1x128xf32, #tpu.memory_space<vmem>>, vector<1x1x128xf32>
    %79 = vector.shape_cast %78 : vector<1x1x128xf32> to vector<1x128xf32>
    %80 = vector.broadcast %79 : vector<1x128xf32> to vector<16x128xf32>
    %81 = arith.addf %77, %80 : vector<16x128xf32>
    %cst_44 = arith.constant 0.000000e+00 : f32
    %82 = vector.broadcast %cst_44 : f32 to vector<16x128xf32>
    %83 = arith.cmpf oge, %81, %82 : vector<16x128xf32>
    %cst_45 = arith.constant 0.00999999977 : f32
    %84 = vector.broadcast %cst_45 : f32 to vector<16x128xf32>
    %85 = arith.mulf %84, %81 : vector<16x128xf32>
    %86 = arith.select %83, %81, %85 : vector<16x128xi1>, vector<16x128xf32>
    %c1_46 = arith.constant 1 : index
    %c0_47 = arith.constant 0 : index
    %c0_48 = arith.constant 0 : index
    %87 = vector.load %arg7[%c1_46, %c0_47, %c0_48] : memref<2x1x128xf32, #tpu.memory_space<vmem>>, vector<1x1x128xf32>
    %88 = vector.shape_cast %87 : vector<1x1x128xf32> to vector<1x128xf32>
    %c1_49 = arith.constant 1 : index
    %c0_50 = arith.constant 0 : index
    %c0_51 = arith.constant 0 : index
    %89 = vector.load %arg8[%c1_49, %c0_50, %c0_51] : memref<2x1x128xf32, #tpu.memory_space<vmem>>, vector<1x1x128xf32>
    %90 = vector.shape_cast %89 : vector<1x1x128xf32> to vector<1x128xf32>
    %cst_52 = arith.constant dense<0.000000e+00> : vector<128xf32>
    %91 = vector.multi_reduction <add>, %86, %cst_52 [0] : vector<16x128xf32> to vector<128xf32>
    %92 = vector.shape_cast %91 : vector<128xf32> to vector<1x128xf32>
    %cst_53 = arith.constant 6.250000e-02 : f32
    %93 = vector.broadcast %cst_53 : f32 to vector<1x128xf32>
    %94 = arith.mulf %92, %93 : vector<1x128xf32>
    %95 = arith.mulf %86, %86 : vector<16x128xf32>
    %cst_54 = arith.constant dense<0.000000e+00> : vector<128xf32>
    %96 = vector.multi_reduction <add>, %95, %cst_54 [0] : vector<16x128xf32> to vector<128xf32>
    %97 = vector.shape_cast %96 : vector<128xf32> to vector<1x128xf32>
    %cst_55 = arith.constant 6.250000e-02 : f32
    %98 = vector.broadcast %cst_55 : f32 to vector<1x128xf32>
    %99 = arith.mulf %97, %98 : vector<1x128xf32>
    %100 = arith.mulf %94, %94 : vector<1x128xf32>
    %101 = arith.subf %99, %100 : vector<1x128xf32>
    %cst_56 = arith.constant 0.000000e+00 : f32
    %102 = vector.broadcast %cst_56 : f32 to vector<1x128xf32>
    %103 = arith.maximumf %101, %102 : vector<1x128xf32>
    %cst_57 = arith.constant 9.99999974E-6 : f32
    %104 = vector.broadcast %cst_57 : f32 to vector<1x128xf32>
    %105 = arith.addf %103, %104 : vector<1x128xf32>
    %106 = math.rsqrt %105 : vector<1x128xf32>
    %107 = arith.mulf %88, %106 : vector<1x128xf32>
    %108 = arith.mulf %94, %107 : vector<1x128xf32>
    %109 = arith.subf %90, %108 : vector<1x128xf32>
    %110 = vector.broadcast %107 : vector<1x128xf32> to vector<16x128xf32>
    %111 = arith.mulf %86, %110 : vector<16x128xf32>
    %112 = vector.broadcast %109 : vector<1x128xf32> to vector<16x128xf32>
    %113 = arith.addf %111, %112 : vector<16x128xf32>
    %c0_58 = arith.constant 0 : index
    %c0_59 = arith.constant 0 : index
    %114 = vector.load %arg9[%c0_58, %c0_59] : memref<128x128xf32, #tpu.memory_space<vmem>>, vector<128x128xf32>
    %cst_60 = arith.constant dense<0.000000e+00> : vector<16x128xf32>
    %115 = tpu.matmul %113, %114, %cst_60 {dimension_numbers = #tpu.dot_dimension_numbers<[1], [0], [0], [1], [0, 0, 1, 1], [], []>} : vector<16x128xf32>, vector<128x128xf32>, vector<16x128xf32> -> vector<16x128xf32>
    %c0_61 = arith.constant 0 : index
    %c0_62 = arith.constant 0 : index
    %116 = vector.load %arg11[%c0_61, %c0_62] : memref<1x128xf32, #tpu.memory_space<vmem>>, vector<1x128xf32>
    %c0_63 = arith.constant 0 : index
    %c0_64 = arith.constant 0 : index
    %117 = vector.load %arg12[%c0_63, %c0_64] : memref<1x128xf32, #tpu.memory_space<vmem>>, vector<1x128xf32>
    %cst_65 = arith.constant dense<0.000000e+00> : vector<128xf32>
    %118 = vector.multi_reduction <add>, %115, %cst_65 [0] : vector<16x128xf32> to vector<128xf32>
    %119 = vector.shape_cast %118 : vector<128xf32> to vector<1x128xf32>
    %cst_66 = arith.constant 6.250000e-02 : f32
    %120 = vector.broadcast %cst_66 : f32 to vector<1x128xf32>
    %121 = arith.mulf %119, %120 : vector<1x128xf32>
    %122 = arith.mulf %115, %115 : vector<16x128xf32>
    %cst_67 = arith.constant dense<0.000000e+00> : vector<128xf32>
    %123 = vector.multi_reduction <add>, %122, %cst_67 [0] : vector<16x128xf32> to vector<128xf32>
    %124 = vector.shape_cast %123 : vector<128xf32> to vector<1x128xf32>
    %cst_68 = arith.constant 6.250000e-02 : f32
    %125 = vector.broadcast %cst_68 : f32 to vector<1x128xf32>
    %126 = arith.mulf %124, %125 : vector<1x128xf32>
    %127 = arith.mulf %121, %121 : vector<1x128xf32>
    %128 = arith.subf %126, %127 : vector<1x128xf32>
    %cst_69 = arith.constant 0.000000e+00 : f32
    %129 = vector.broadcast %cst_69 : f32 to vector<1x128xf32>
    %130 = arith.maximumf %128, %129 : vector<1x128xf32>
    %cst_70 = arith.constant 9.99999974E-6 : f32
    %131 = vector.broadcast %cst_70 : f32 to vector<1x128xf32>
    %132 = arith.addf %130, %131 : vector<1x128xf32>
    %133 = math.rsqrt %132 : vector<1x128xf32>
    %134 = arith.mulf %116, %133 : vector<1x128xf32>
    %135 = arith.mulf %121, %134 : vector<1x128xf32>
    %136 = arith.subf %117, %135 : vector<1x128xf32>
    %137 = vector.broadcast %134 : vector<1x128xf32> to vector<16x128xf32>
    %138 = arith.mulf %115, %137 : vector<16x128xf32>
    %139 = vector.broadcast %136 : vector<1x128xf32> to vector<16x128xf32>
    %140 = arith.addf %138, %139 : vector<16x128xf32>
    %c0_71 = arith.constant 0 : index
    %c0_72 = arith.constant 0 : index
    %141 = vector.load %arg13[%c0_71, %c0_72] : memref<16x128xf32, #tpu.memory_space<vmem>>, vector<16x128xf32>
    tpu.vector_store %arg13[%c0_71, %c0_72], %140 {strides = array<i32>} : memref<16x128xf32, #tpu.memory_space<vmem>>, vector<16x128xf32>,
    return
  }
}

</mosaic_0001>

<llo_original>
// kernel: tpu_custom_call.1
$region0: #{tpu_custom_call.1}
  #allocation0 [shape = 'u32[]', space=smem, size = 0x4, offset = 0x4, fixed_abs, tag = 'smem constant byte address 0x4 - core index']
  #allocation1 [shape = 'u32[144,128]{1,0:T(1,128)}', space=vmem, size = 0x12000, scoped, tag = 'internal scratch']
  %s0 = inlined_call_operand.hbm [shape: f32[16,128], index: 0, kind: input, shape index: {}]
  %s1 = inlined_call_operand.hbm [shape: f32[128,128], index: 1, kind: input, shape index: {}]
  %s2 = inlined_call_operand.vmem [shape: f32[1,128], index: 2, kind: input, shape index: {}]
  %s3 = inlined_call_operand.hbm [shape: f32[1,128], index: 3, kind: input, shape index: {}]
  %s4 = inlined_call_operand.hbm [shape: f32[1,128], index: 4, kind: input, shape index: {}]
  %s5 = inlined_call_operand.hbm [shape: f32[2,128,128], index: 5, kind: input, shape index: {}]
  %s6 = inlined_call_operand.vmem [shape: f32[2,1,128], index: 6, kind: input, shape index: {}]
  %s7 = inlined_call_operand.vmem [shape: f32[2,1,128], index: 7, kind: input, shape index: {}]
  %s8 = inlined_call_operand.vmem [shape: f32[2,1,128], index: 8, kind: input, shape index: {}]
  %s9 = inlined_call_operand.hbm [shape: f32[128,128], index: 9, kind: input, shape index: {}]
  %s10 = inlined_call_operand.vmem [shape: f32[1,128], index: 10, kind: input, shape index: {}]
  %s11 = inlined_call_operand.vmem [shape: f32[1,128], index: 11, kind: input, shape index: {}]
  %s12 = inlined_call_operand.vmem [shape: f32[1,128], index: 12, kind: input, shape index: {}]
  %s13 = inlined_call_operand.hbm [shape: f32[16,128], index: 13, kind: output, shape index: {}]
  %s14 = sld [smem:[#allocation0]]
  $region86: #{tpu_custom_call.1} parent=0
    _
  %s16 = ssub.s32 1, %s14
  %s17 = scalar_select 0, %s16, %s14
  $region1: #{tpu_custom_call.1} parent=0
    #allocation2 [shape = 'u8[8192]{0}', space=vmem, size = 0x2000, scoped, tag = 'input window, operand 0, single buffered']
    #allocation3 [shape = 's32[1]{0}', space=sflag, size = 0x4, scoped, tag = 'scoped memory for tpu_custom_call.1']
    #allocation4 [shape = 's32[1]{0}', space=sflag, size = 0x4, scoped, tag = 'scoped memory for tpu_custom_call.1']
    #allocation5 [shape = 'u8[65536]{0}', space=vmem, size = 0x10000, scoped, tag = 'input window, operand 1, single buffered']
    #allocation6 [shape = 's32[1]{0}', space=sflag, size = 0x4, scoped, tag = 'scoped memory for tpu_custom_call.1']
    #allocation7 [shape = 'u8[512]{0}', space=vmem, size = 0x400, scoped, tag = 'input window, operand 3, single buffered']
    #allocation8 [shape = 'u8[512]{0}', space=vmem, size = 0x400, scoped, tag = 'input window, operand 4, single buffered']
    #allocation9 [shape = 's32[1]{0}', space=sflag, size = 0x4, scoped, tag = 'scoped memory for tpu_custom_call.1']
    #allocation10 [shape = 'u8[131072]{0}', space=vmem, size = 0x20000, scoped, tag = 'input window, operand 5, single buffered']
    #allocation11 [shape = 'u8[65536]{0}', space=vmem, size = 0x10000, scoped, tag = 'input window, operand 9, single buffered']
    #allocation12 [shape = 's32[1]{0}', space=sflag, size = 0x4, scoped, tag = 'scoped memory for tpu_custom_call.1']
    #allocation13 [shape = 'u8[8192]{0}', space=vmem, size = 0x2000, scoped, tag = 'output window, operand 0, single buffered']
    %18 = vsyncpa [#allocation3], 0
    %19 = vsyncpa [#allocation6], 0
    %20 = vsyncpa [#allocation9], 0
    %21 = vsyncpa [#allocation12], 0
    %22 = vsyncpa [#allocation4], 0
    // Predicated region
    $region2: #{tpu_custom_call.1} parent=1 // pred_check
      _
    $region3: #{tpu_custom_call.1} parent=1 // pred_check_branch
      %24 = sbr.rel (0) target = $region5
    $region4: #{tpu_custom_call.1} parent=1 // pred_region
      %s26 = ssub.s32 256, 256
      %27 = vsyncadd [#allocation3], %s26
      %s28 = sshll.u32 [#allocation2], 4
      %s29 = int_to_ptr.vmem [resolvable:$true] %s28
      %34 = dma.hbm_to_vmem [thread:$0]  %s0, 256, %s29, [#allocation3], 128, 128, 8
    $region5: #{tpu_custom_call.1} parent=1 // pred_fallthru
      _
    // Predicated region
    $region6: #{tpu_custom_call.1} parent=1 // pred_check
      _
    $region7: #{tpu_custom_call.1} parent=1 // pred_check_branch
      %36 = sbr.rel (0) target = $region9
    $region8: #{tpu_custom_call.1} parent=1 // pred_region
      %s38 = ssub.s32 2048, 2048
      %39 = vsyncadd [#allocation6], %s38
      %s40 = sshll.u32 [#allocation5], 4
      %s41 = int_to_ptr.vmem [resolvable:$true] %s40
      %46 = dma.hbm_to_vmem [thread:$0]  %s1, 2048, %s41, [#allocation6], 128, 128, 8
    $region9: #{tpu_custom_call.1} parent=1 // pred_fallthru
      _
    // Predicated region
    $region10: #{tpu_custom_call.1} parent=1 // pred_check
      _
    $region11: #{tpu_custom_call.1} parent=1 // pred_check_branch
      %48 = sbr.rel (0) target = $region13
    $region12: #{tpu_custom_call.1} parent=1 // pred_region
      _
    $region13: #{tpu_custom_call.1} parent=1 // pred_fallthru
      _
    // Predicated region
    $region14: #{tpu_custom_call.1} parent=1 // pred_check
      _
    $region15: #{tpu_custom_call.1} parent=1 // pred_check_branch
      %50 = sbr.rel (0) target = $region17
    $region16: #{tpu_custom_call.1} parent=1 // pred_region
      %s52 = ssub.s32 16, 16
      %53 = vsyncadd [#allocation6], %s52
      %s55 = sshll.u32 [#allocation7], 4
      %s56 = int_to_ptr.vmem [resolvable:$true] %s55
      %58 = dma.hbm_to_vmem [thread:$0]  %s3, 16, %s56, [#allocation6]
    $region17: #{tpu_custom_call.1} parent=1 // pred_fallthru
      _
    // Predicated region
    $region18: #{tpu_custom_call.1} parent=1 // pred_check
      _
    $region19: #{tpu_custom_call.1} parent=1 // pred_check_branch
      %60 = sbr.rel (0) target = $region21
    $region20: #{tpu_custom_call.1} parent=1 // pred_region
      %s62 = ssub.s32 16, 16
      %63 = vsyncadd [#allocation9], %s62
      %s65 = sshll.u32 [#allocation8], 4
      %s66 = int_to_ptr.vmem [resolvable:$true] %s65
      %68 = dma.hbm_to_vmem [thread:$0]  %s4, 16, %s66, [#allocation9]
    $region21: #{tpu_custom_call.1} parent=1 // pred_fallthru
      _
    // Predicated region
    $region22: #{tpu_custom_call.1} parent=1 // pred_check
      _
    $region23: #{tpu_custom_call.1} parent=1 // pred_check_branch
      %70 = sbr.rel (0) target = $region25
    $region24: #{tpu_custom_call.1} parent=1 // pred_region
      %s72 = ssub.s32 4096, 4096
      %73 = vsyncadd [#allocation9], %s72
      %s74 = sshll.u32 [#allocation10], 4
      %s75 = int_to_ptr.vmem [resolvable:$true] %s74
      %80 = dma.hbm_to_vmem [thread:$0]  %s5, 4096, %s75, [#allocation9], 128, 128, 8
    $region25: #{tpu_custom_call.1} parent=1 // pred_fallthru
      _
    // Predicated region
    $region26: #{tpu_custom_call.1} parent=1 // pred_check
      _
    $region27: #{tpu_custom_call.1} parent=1 // pred_check_branch
      %82 = sbr.rel (0) target = $region29
    $region28: #{tpu_custom_call.1} parent=1 // pred_region
      _
    $region29: #{tpu_custom_call.1} parent=1 // pred_fallthru
      _
    // Predicated region
    $region30: #{tpu_custom_call.1} parent=1 // pred_check
      _
    $region31: #{tpu_custom_call.1} parent=1 // pred_check_branch
      %84 = sbr.rel (0) target = $region33
    $region32: #{tpu_custom_call.1} parent=1 // pred_region
      _
    $region33: #{tpu_custom_call.1} parent=1 // pred_fallthru
      _
    // Predicated region
    $region34: #{tpu_custom_call.1} parent=1 // pred_check
      _
    $region35: #{tpu_custom_call.1} parent=1 // pred_check_branch
      %86 = sbr.rel (0) target = $region37
    $region36: #{tpu_custom_call.1} parent=1 // pred_region
      _
    $region37: #{tpu_custom_call.1} parent=1 // pred_fallthru
      _
    // Predicated region
    $region38: #{tpu_custom_call.1} parent=1 // pred_check
      _
    $region39: #{tpu_custom_call.1} parent=1 // pred_check_branch
      %88 = sbr.rel (0) target = $region41
    $region40: #{tpu_custom_call.1} parent=1 // pred_region
      %s90 = ssub.s32 2048, 2048
      %91 = vsyncadd [#allocation12], %s90
      %s92 = sshll.u32 [#allocation11], 4
      %s93 = int_to_ptr.vmem [resolvable:$true] %s92
      %98 = dma.hbm_to_vmem [thread:$0]  %s9, 2048, %s93, [#allocation12], 128, 128, 8
    $region41: #{tpu_custom_call.1} parent=1 // pred_fallthru
      _
    // Predicated region
    $region42: #{tpu_custom_call.1} parent=1 // pred_check
      _
    $region43: #{tpu_custom_call.1} parent=1 // pred_check_branch
      %100 = sbr.rel (0) target = $region45
    $region44: #{tpu_custom_call.1} parent=1 // pred_region
      _
    $region45: #{tpu_custom_call.1} parent=1 // pred_fallthru
      _
    // Predicated region
    $region46: #{tpu_custom_call.1} parent=1 // pred_check
      _
    $region47: #{tpu_custom_call.1} parent=1 // pred_check_branch
      %102 = sbr.rel (0) target = $region49
    $region48: #{tpu_custom_call.1} parent=1 // pred_region
      _
    $region49: #{tpu_custom_call.1} parent=1 // pred_fallthru
      _
    // Predicated region
    $region50: #{tpu_custom_call.1} parent=1 // pred_check
      _
    $region51: #{tpu_custom_call.1} parent=1 // pred_check_branch
      %104 = sbr.rel (0) target = $region53
    $region52: #{tpu_custom_call.1} parent=1 // pred_region
      _
    $region53: #{tpu_custom_call.1} parent=1 // pred_fallthru
      _
    // Predicated region
    $region54: #{tpu_custom_call.1} parent=1 // pred_check
      _
    $region55: #{tpu_custom_call.1} parent=1 // pred_check_branch
      %106 = sbr.rel (0) target = $region57
    $region56: #{tpu_custom_call.1} parent=1 // pred_region
      %107 = dma.done [#allocation3], 256
    $region57: #{tpu_custom_call.1} parent=1 // pred_fallthru
      _
    // Predicated region
    $region58: #{tpu_custom_call.1} parent=1 // pred_check
      _
    $region59: #{tpu_custom_call.1} parent=1 // pred_check_branch
      %109 = sbr.rel (0) target = $region61
    $region60: #{tpu_custom_call.1} parent=1 // pred_region
      %110 = dma.done [#allocation6], 2048
    $region61: #{tpu_custom_call.1} parent=1 // pred_fallthru
      _
    // Predicated region
    $region62: #{tpu_custom_call.1} parent=1 // pred_check
      _
    $region63: #{tpu_custom_call.1} parent=1 // pred_check_branch
      %112 = sbr.rel (0) target = $region65
    $region64: #{tpu_custom_call.1} parent=1 // pred_region
      %113 = dma.done [#allocation6], 16
    $region65: #{tpu_custom_call.1} parent=1 // pred_fallthru
      _
    // Predicated region
    $region66: #{tpu_custom_call.1} parent=1 // pred_check
      _
    $region67: #{tpu_custom_call.1} parent=1 // pred_check_branch
      %115 = sbr.rel (0) target = $region69
    $region68: #{tpu_custom_call.1} parent=1 // pred_region
      %116 = dma.done [#allocation9], 16
    $region69: #{tpu_custom_call.1} parent=1 // pred_fallthru
      _
    // Predicated region
    $region70: #{tpu_custom_call.1} parent=1 // pred_check
      _
    $region71: #{tpu_custom_call.1} parent=1 // pred_check_branch
      %118 = sbr.rel (0) target = $region73
    $region72: #{tpu_custom_call.1} parent=1 // pred_region
      %119 = dma.done [#allocation9], 4096
    $region73: #{tpu_custom_call.1} parent=1 // pred_fallthru
      _
    // Predicated region
    $region74: #{tpu_custom_call.1} parent=1 // pred_check
      _
    $region75: #{tpu_custom_call.1} parent=1 // pred_check_branch
      %121 = sbr.rel (0) target = $region77
    $region76: #{tpu_custom_call.1} parent=1 // pred_region
      %122 = dma.done [#allocation12], 2048
    $region77: #{tpu_custom_call.1} parent=1 // pred_fallthru
      _
    %v123 = vld [vmem:[#allocation2] sm:$0xff]
    %v124 = vld [vmem:[#allocation2 + $0x8] sm:$0xff]
    %v125 = vld [vmem:[#allocation5] sm:$0xff]
    %v126 = vld [vmem:[#allocation5 + $0x8] sm:$0xff]
    %v127 = vld [vmem:[#allocation5 + $0x10] sm:$0xff]
    %v128 = vld [vmem:[#allocation5 + $0x18] sm:$0xff]
    %v129 = vld [vmem:[#allocation5 + $0x20] sm:$0xff]
    %v130 = vld [vmem:[#allocation5 + $0x28] sm:$0xff]
    %v131 = vld [vmem:[#allocation5 + $0x30] sm:$0xff]
    %v132 = vld [vmem:[#allocation5 + $0x38] sm:$0xff]
    %v133 = vld [vmem:[#allocation5 + $0x40] sm:$0xff]
    %v134 = vld [vmem:[#allocation5 + $0x48] sm:$0xff]
    %v135 = vld [vmem:[#allocation5 + $0x50] sm:$0xff]
    %v136 = vld [vmem:[#allocation5 + $0x58] sm:$0xff]
    %v137 = vld [vmem:[#allocation5 + $0x60] sm:$0xff]
    %v138 = vld [vmem:[#allocation5 + $0x68] sm:$0xff]
    %v139 = vld [vmem:[#allocation5 + $0x70] sm:$0xff]
    %v140 = vld [vmem:[#allocation5 + $0x78] sm:$0xff]
    %v141 = vld [vmem:[%s2] sm:$0x1]
    %v143 = vlaneseq
    %v144 = vshrl.u32 %v143, 7
    %v145 = vsub.s32 0, %v144
    %v146 = vrot.slane %v141, %v145
    %148 = vmatprep.subr.mxu0 0.0
    %149 = vmatpush1.msra.mxu0 %v140
    %150 = vmatprep.subr.mxu0 0.0
    %151 = vmatpush1.msra.mxu0 %v139
    %152 = vmatprep.subr.mxu0 0.0
    %153 = vmatpush1.msra.mxu0 %v138
    %154 = vmatprep.subr.mxu0 0.0
    %155 = vmatpush1.msra.mxu0 %v137
    %156 = vmatprep.subr.mxu0 0.0
    %157 = vmatpush1.msra.mxu0 %v136
    %158 = vmatprep.subr.mxu0 0.0
    %159 = vmatpush1.msra.mxu0 %v135
    %160 = vmatprep.subr.mxu0 0.0
    %161 = vmatpush1.msra.mxu0 %v134
    %162 = vmatprep.subr.mxu0 0.0
    %163 = vmatpush1.msra.mxu0 %v133
    %164 = vmatprep.subr.mxu0 0.0
    %165 = vmatpush1.msra.mxu0 %v132
    %166 = vmatprep.subr.mxu0 0.0
    %167 = vmatpush1.msra.mxu0 %v131
    %168 = vmatprep.subr.mxu0 0.0
    %169 = vmatpush1.msra.mxu0 %v130
    %170 = vmatprep.subr.mxu0 0.0
    %171 = vmatpush1.msra.mxu0 %v129
    %172 = vmatprep.subr.mxu0 0.0
    %173 = vmatpush1.msra.mxu0 %v128
    %174 = vmatprep.subr.mxu0 0.0
    %175 = vmatpush1.msra.mxu0 %v127
    %176 = vmatprep.subr.mxu0 0.0
    %177 = vmatpush1.msra.mxu0 %v126
    %178 = vmatprep.subr.mxu0 0.0
    %179 = vmatpush1.msra.mxu0 %v125
    %180 = vmatprep.subr.mxu0 0.0
    %181 = vmatpush2.msra.mxu0 0.0
    %182 = vmatprep.subr.mxu0 0.0
    %183 = vmatpush2.msra.mxu0 0.0
    %184 = vmatprep.subr.mxu0 0.0
    %185 = vmatpush2.msra.mxu0 0.0
    %186 = vmatprep.subr.mxu0 0.0
    %187 = vmatpush2.msra.mxu0 0.0
    %188 = vmatprep.subr.mxu0 0.0
    %189 = vmatpush2.msra.mxu0 0.0
    %190 = vmatprep.subr.mxu0 0.0
    %191 = vmatpush2.msra.mxu0 0.0
    %192 = vmatprep.subr.mxu0 0.0
    %193 = vmatpush2.msra.mxu0 0.0
    %194 = vmatprep.subr.mxu0 0.0
    %195 = vmatpush2.msra.mxu0 0.0
    %196 = vmatprep.subr.mxu0 0.0
    %197 = vmatpush2.msra.mxu0 0.0
    %198 = vmatprep.subr.mxu0 0.0
    %199 = vmatpush2.msra.mxu0 0.0
    %200 = vmatprep.subr.mxu0 0.0
    %201 = vmatpush2.msra.mxu0 0.0
    %202 = vmatprep.subr.mxu0 0.0
    %203 = vmatpush2.msra.mxu0 0.0
    %204 = vmatprep.subr.mxu0 0.0
    %205 = vmatpush2.msra.mxu0 0.0
    %206 = vmatprep.subr.mxu0 0.0
    %207 = vmatpush2.msra.mxu0 0.0
    %208 = vmatprep.subr.mxu0 0.0
    %209 = vmatpush2.msra.mxu0 0.0
    %210 = vmatprep.subr.mxu0 0.0
    %211 = vmatpush2.msra.mxu0 0.0
    %212 = vmatprep.mubr.f32.mxu0 0.0
    %213 = vmatmul.mubr.f32.gmra.mxu0 %v123
    %v214 = vpop.f32.mrf.mxu0
    %v215 = vadd.f32 %v146, %v214
    %v216 = vpop.f32.mrf.mxu0
    %217 = vmatprep.mubr.f32.mxu0 0.0
    %218 = vmatmul.mubr.f32.gmra.mxu0 %v124
    %v219 = vpop.f32.mrf.mxu0
    %v220 = vadd.f32 %v146, %v219
    %v221 = vpop.f32.mrf.mxu0
    %222 = vdwg.mxu0
    %vm223 = vcmp.ge.f32.partialorder %v215, 0.0
    %vm224 = vcmp.ge.f32.partialorder %v220, 0.0
    %v225 = vmul.f32 %v215, 0.01
    %v226 = vmul.f32 %v220, 0.01
    %v227 = vsel %vm223, %v215, %v225
    %v228 = vsel %vm224, %v220, %v226
    %v229 = vld [vmem:[#allocation7] sm:$0x1]
    %v230 = vld [vmem:[#allocation8] sm:$0x1]
    %v231 = vadd.f32 %v227, %v228
    %v232 = vrot.slane %v231, 4
    %v233 = vadd.f32 %v231, %v232
    %v234 = vrot.slane %v233, 2
    %v235 = vadd.f32 %v233, %v234
    %v236 = vrot.slane %v235, 1
    %v237 = vadd.f32 %v235, %v236
    %v238 = vmul.f32 %v237, 0.0625
    %v239 = vmul.f32 %v227, %v227
    %v240 = vmul.f32 %v228, %v228
    %v241 = vadd.f32 %v239, %v240
    %v242 = vrot.slane %v241, 4
    %v243 = vadd.f32 %v241, %v242
    %v244 = vrot.slane %v243, 2
    %v245 = vadd.f32 %v243, %v244
    %v246 = vrot.slane %v245, 1
    %v247 = vadd.f32 %v245, %v246
    %v248 = vmul.f32 %v247, 0.0625
    %v249 = vmul.f32 %v238, %v238
    %v250 = vsub.f32 %v248, %v249
    %v251 = vmax.f32 %v250, 0.0
    %v252 = vadd.f32 %v251, 1e-05
    %v253 = vrsqrt.pop %v252
    %v254 = vmul.f32 %v229, %v253
    %v255 = vmul.f32 %v238, %v254
    %v256 = vsub.f32 %v230, %v255
    %v258 = vlaneseq
    %v259 = vshrl.u32 %v258, 7
    %v260 = vsub.s32 0, %v259
    %v261 = vrot.slane %v254, %v260
    %v263 = vmul.f32 %v227, %v261
    %v264 = vmul.f32 %v228, %v261
    %v266 = vlaneseq
    %v267 = vshrl.u32 %v266, 7
    %v268 = vsub.s32 0, %v267
    %v269 = vrot.slane %v256, %v268
    %v271 = vadd.f32 %v263, %v269
    %v272 = vadd.f32 %v264, %v269
    %v273 = vld [vmem:[#allocation10] sm:$0xff]
    %v274 = vld [vmem:[#allocation10 + $0x8] sm:$0xff]
    %v275 = vld [vmem:[#allocation10 + $0x10] sm:$0xff]
    %v276 = vld [vmem:[#allocation10 + $0x18] sm:$0xff]
    %v277 = vld [vmem:[#allocation10 + $0x20] sm:$0xff]
    %v278 = vld [vmem:[#allocation10 + $0x28] sm:$0xff]
    %v279 = vld [vmem:[#allocation10 + $0x30] sm:$0xff]
    %v280 = vld [vmem:[#allocation10 + $0x38] sm:$0xff]
    %v281 = vld [vmem:[#allocation10 + $0x40] sm:$0xff]
    %v282 = vld [vmem:[#allocation10 + $0x48] sm:$0xff]
    %v283 = vld [vmem:[#allocation10 + $0x50] sm:$0xff]
    %v284 = vld [vmem:[#allocation10 + $0x58] sm:$0xff]
    %v285 = vld [vmem:[#allocation10 + $0x60] sm:$0xff]
    %v286 = vld [vmem:[#allocation10 + $0x68] sm:$0xff]
    %v287 = vld [vmem:[#allocation10 + $0x70] sm:$0xff]
    %v288 = vld [vmem:[#allocation10 + $0x78] sm:$0xff]
    %v289 = vld [vmem:[%s6] sm:$0x1]
    %v291 = vlaneseq
    %v292 = vshrl.u32 %v291, 7
    %v293 = vsub.s32 0, %v292
    %v294 = vrot.slane %v289, %v293
    %296 = vmatprep.subr.mxu0 0.0
    %297 = vmatpush1.msra.mxu0 %v288
    %298 = vmatprep.subr.mxu0 0.0
    %299 = vmatpush1.msra.mxu0 %v287
    %300 = vmatprep.subr.mxu0 0.0
    %301 = vmatpush1.msra.mxu0 %v286
    %302 = vmatprep.subr.mxu0 0.0
    %303 = vmatpush1.msra.mxu0 %v285
    %304 = vmatprep.subr.mxu0 0.0
    %305 = vmatpush1.msra.mxu0 %v284
    %306 = vmatprep.subr.mxu0 0.0
    %307 = vmatpush1.msra.mxu0 %v283
    %308 = vmatprep.subr.mxu0 0.0
    %309 = vmatpush1.msra.mxu0 %v282
    %310 = vmatprep.subr.mxu0 0.0
    %311 = vmatpush1.msra.mxu0 %v281
    %312 = vmatprep.subr.mxu0 0.0
    %313 = vmatpush1.msra.mxu0 %v280
    %314 = vmatprep.subr.mxu0 0.0
    %315 = vmatpush1.msra.mxu0 %v279
    %316 = vmatprep.subr.mxu0 0.0
    %317 = vmatpush1.msra.mxu0 %v278
    %318 = vmatprep.subr.mxu0 0.0
    %319 = vmatpush1.msra.mxu0 %v277
    %320 = vmatprep.subr.mxu0 0.0
    %321 = vmatpush1.msra.mxu0 %v276
    %322 = vmatprep.subr.mxu0 0.0
    %323 = vmatpush1.msra.mxu0 %v275
    %324 = vmatprep.subr.mxu0 0.0
    %325 = vmatpush1.msra.mxu0 %v274
    %326 = vmatprep.subr.mxu0 0.0
    %327 = vmatpush1.msra.mxu0 %v273
    %328 = vmatprep.subr.mxu0 0.0
    %329 = vmatpush2.msra.mxu0 0.0
    %330 = vmatprep.subr.mxu0 0.0
    %331 = vmatpush2.msra.mxu0 0.0
    %332 = vmatprep.subr.mxu0 0.0
    %333 = vmatpush2.msra.mxu0 0.0
    %334 = vmatprep.subr.mxu0 0.0
    %335 = vmatpush2.msra.mxu0 0.0
    %336 = vmatprep.subr.mxu0 0.0
    %337 = vmatpush2.msra.mxu0 0.0
    %338 = vmatprep.subr.mxu0 0.0
    %339 = vmatpush2.msra.mxu0 0.0
    %340 = vmatprep.subr.mxu0 0.0
    %341 = vmatpush2.msra.mxu0 0.0
    %342 = vmatprep.subr.mxu0 0.0
    %343 = vmatpush2.msra.mxu0 0.0
    %344 = vmatprep.subr.mxu0 0.0
    %345 = vmatpush2.msra.mxu0 0.0
    %346 = vmatprep.subr.mxu0 0.0
    %347 = vmatpush2.msra.mxu0 0.0
    %348 = vmatprep.subr.mxu0 0.0
    %349 = vmatpush2.msra.mxu0 0.0
    %350 = vmatprep.subr.mxu0 0.0
    %351 = vmatpush2.msra.mxu0 0.0
    %352 = vmatprep.subr.mxu0 0.0
    %353 = vmatpush2.msra.mxu0 0.0
    %354 = vmatprep.subr.mxu0 0.0
    %355 = vmatpush2.msra.mxu0 0.0
    %356 = vmatprep.subr.mxu0 0.0
    %357 = vmatpush2.msra.mxu0 0.0
    %358 = vmatprep.subr.mxu0 0.0
    %359 = vmatpush2.msra.mxu0 0.0
    %360 = vmatprep.mubr.f32.mxu0 0.0
    %361 = vmatmul.mubr.f32.gmra.mxu0 %v271
    %v362 = vpop.f32.mrf.mxu0
    %v363 = vadd.f32 %v294, %v362
    %v364 = vpop.f32.mrf.mxu0
    %365 = vmatprep.mubr.f32.mxu0 0.0
    %366 = vmatmul.mubr.f32.gmra.mxu0 %v272
    %v367 = vpop.f32.mrf.mxu0
    %v368 = vadd.f32 %v294, %v367
    %v369 = vpop.f32.mrf.mxu0
    %370 = vdwg.mxu0
    %vm371 = vcmp.ge.f32.partialorder %v363, 0.0
    %vm372 = vcmp.ge.f32.partialorder %v368, 0.0
    %v373 = vmul.f32 %v363, 0.01
    %v374 = vmul.f32 %v368, 0.01
    %v375 = vsel %vm371, %v363, %v373
    %v376 = vsel %vm372, %v368, %v374
    %v377 = vld [vmem:[%s7] sm:$0x1]
    %v378 = vld [vmem:[%s8] sm:$0x1]
    %v379 = vadd.f32 %v375, %v376
    %v380 = vrot.slane %v379, 4
    %v381 = vadd.f32 %v379, %v380
    %v382 = vrot.slane %v381, 2
    %v383 = vadd.f32 %v381, %v382
    %v384 = vrot.slane %v383, 1
    %v385 = vadd.f32 %v383, %v384
    %v386 = vmul.f32 %v385, 0.0625
    %v387 = vmul.f32 %v375, %v375
    %v388 = vmul.f32 %v376, %v376
    %v389 = vadd.f32 %v387, %v388
    %v390 = vrot.slane %v389, 4
    %v391 = vadd.f32 %v389, %v390
    %v392 = vrot.slane %v391, 2
    %v393 = vadd.f32 %v391, %v392
    %v394 = vrot.slane %v393, 1
    %v395 = vadd.f32 %v393, %v394
    %v396 = vmul.f32 %v395, 0.0625
    %v397 = vmul.f32 %v386, %v386
    %v398 = vsub.f32 %v396, %v397
    %v399 = vmax.f32 %v398, 0.0
    %v400 = vadd.f32 %v399, 1e-05
    %v401 = vrsqrt.pop %v400
    %v402 = vmul.f32 %v377, %v401
    %v403 = vmul.f32 %v386, %v402
    %v404 = vsub.f32 %v378, %v403
    %v406 = vlaneseq
    %v407 = vshrl.u32 %v406, 7
    %v408 = vsub.s32 0, %v407
    %v409 = vrot.slane %v402, %v408
    %v411 = vmul.f32 %v375, %v409
    %v412 = vmul.f32 %v376, %v409
    %v414 = vlaneseq
    %v415 = vshrl.u32 %v414, 7
    %v416 = vsub.s32 0, %v415
    %v417 = vrot.slane %v404, %v416
    %v419 = vadd.f32 %v411, %v417
    %v420 = vadd.f32 %v412, %v417
    %s421 = scalar_lea.vmem [#allocation10], 128
    %v422 = vld [vmem:[%s421] sm:$0xff]
    %v423 = vld [vmem:[%s421 + $0x8] sm:$0xff]
    %v424 = vld [vmem:[%s421 + $0x10] sm:$0xff]
    %v425 = vld [vmem:[%s421 + $0x18] sm:$0xff]
    %v426 = vld [vmem:[%s421 + $0x20] sm:$0xff]
    %v427 = vld [vmem:[%s421 + $0x28] sm:$0xff]
    %v428 = vld [vmem:[%s421 + $0x30] sm:$0xff]
    %v429 = vld [vmem:[%s421 + $0x38] sm:$0xff]
    %v430 = vld [vmem:[%s421 + $0x40] sm:$0xff]
    %v431 = vld [vmem:[%s421 + $0x48] sm:$0xff]
    %v432 = vld [vmem:[%s421 + $0x50] sm:$0xff]
    %v433 = vld [vmem:[%s421 + $0x58] sm:$0xff]
    %v434 = vld [vmem:[%s421 + $0x60] sm:$0xff]
    %v435 = vld [vmem:[%s421 + $0x68] sm:$0xff]
    %v436 = vld [vmem:[%s421 + $0x70] sm:$0xff]
    %v437 = vld [vmem:[%s421 + $0x78] sm:$0xff]
    %s438 = scalar_lea.vmem %s6, 1
    %v439 = vld [vmem:[%s438] sm:$0x1]
    %v441 = vlaneseq
    %v442 = vshrl.u32 %v441, 7
    %v443 = vsub.s32 0, %v442
    %v444 = vrot.slane %v439, %v443
    %446 = vmatprep.subr.mxu0 0.0
    %447 = vmatpush1.msra.mxu0 %v437
    %448 = vmatprep.subr.mxu0 0.0
    %449 = vmatpush1.msra.mxu0 %v436
    %450 = vmatprep.subr.mxu0 0.0
    %451 = vmatpush1.msra.mxu0 %v435
    %452 = vmatprep.subr.mxu0 0.0
    %453 = vmatpush1.msra.mxu0 %v434
    %454 = vmatprep.subr.mxu0 0.0
    %455 = vmatpush1.msra.mxu0 %v433
    %456 = vmatprep.subr.mxu0 0.0
    %457 = vmatpush1.msra.mxu0 %v432
    %458 = vmatprep.subr.mxu0 0.0
    %459 = vmatpush1.msra.mxu0 %v431
    %460 = vmatprep.subr.mxu0 0.0
    %461 = vmatpush1.msra.mxu0 %v430
    %462 = vmatprep.subr.mxu0 0.0
    %463 = vmatpush1.msra.mxu0 %v429
    %464 = vmatprep.subr.mxu0 0.0
    %465 = vmatpush1.msra.mxu0 %v428
    %466 = vmatprep.subr.mxu0 0.0
    %467 = vmatpush1.msra.mxu0 %v427
    %468 = vmatprep.subr.mxu0 0.0
    %469 = vmatpush1.msra.mxu0 %v426
    %470 = vmatprep.subr.mxu0 0.0
    %471 = vmatpush1.msra.mxu0 %v425
    %472 = vmatprep.subr.mxu0 0.0
    %473 = vmatpush1.msra.mxu0 %v424
    %474 = vmatprep.subr.mxu0 0.0
    %475 = vmatpush1.msra.mxu0 %v423
    %476 = vmatprep.subr.mxu0 0.0
    %477 = vmatpush1.msra.mxu0 %v422
    %478 = vmatprep.subr.mxu0 0.0
    %479 = vmatpush2.msra.mxu0 0.0
    %480 = vmatprep.subr.mxu0 0.0
    %481 = vmatpush2.msra.mxu0 0.0
    %482 = vmatprep.subr.mxu0 0.0
    %483 = vmatpush2.msra.mxu0 0.0
    %484 = vmatprep.subr.mxu0 0.0
    %485 = vmatpush2.msra.mxu0 0.0
    %486 = vmatprep.subr.mxu0 0.0
    %487 = vmatpush2.msra.mxu0 0.0
    %488 = vmatprep.subr.mxu0 0.0
    %489 = vmatpush2.msra.mxu0 0.0
    %490 = vmatprep.subr.mxu0 0.0
    %491 = vmatpush2.msra.mxu0 0.0
    %492 = vmatprep.subr.mxu0 0.0
    %493 = vmatpush2.msra.mxu0 0.0
    %494 = vmatprep.subr.mxu0 0.0
    %495 = vmatpush2.msra.mxu0 0.0
    %496 = vmatprep.subr.mxu0 0.0
    %497 = vmatpush2.msra.mxu0 0.0
    %498 = vmatprep.subr.mxu0 0.0
    %499 = vmatpush2.msra.mxu0 0.0
    %500 = vmatprep.subr.mxu0 0.0
    %501 = vmatpush2.msra.mxu0 0.0
    %502 = vmatprep.subr.mxu0 0.0
    %503 = vmatpush2.msra.mxu0 0.0
    %504 = vmatprep.subr.mxu0 0.0
    %505 = vmatpush2.msra.mxu0 0.0
    %506 = vmatprep.subr.mxu0 0.0
    %507 = vmatpush2.msra.mxu0 0.0
    %508 = vmatprep.subr.mxu0 0.0
    %509 = vmatpush2.msra.mxu0 0.0
    %510 = vmatprep.mubr.f32.mxu0 0.0
    %511 = vmatmul.mubr.f32.gmra.mxu0 %v419
    %v512 = vpop.f32.mrf.mxu0
    %v513 = vadd.f32 %v444, %v512
    %v514 = vpop.f32.mrf.mxu0
    %515 = vmatprep.mubr.f32.mxu0 0.0
    %516 = vmatmul.mubr.f32.gmra.mxu0 %v420
    %v517 = vpop.f32.mrf.mxu0
    %v518 = vadd.f32 %v444, %v517
    %v519 = vpop.f32.mrf.mxu0
    %520 = vdwg.mxu0
    %vm521 = vcmp.ge.f32.partialorder %v513, 0.0
    %vm522 = vcmp.ge.f32.partialorder %v518, 0.0
    %v523 = vmul.f32 %v513, 0.01
    %v524 = vmul.f32 %v518, 0.01
    %v525 = vsel %vm521, %v513, %v523
    %v526 = vsel %vm522, %v518, %v524
    %s527 = scalar_lea.vmem %s7, 1
    %v528 = vld [vmem:[%s527] sm:$0x1]
    %s529 = scalar_lea.vmem %s8, 1
    %v530 = vld [vmem:[%s529] sm:$0x1]
    %v531 = vadd.f32 %v525, %v526
    %v532 = vrot.slane %v531, 4
    %v533 = vadd.f32 %v531, %v532
    %v534 = vrot.slane %v533, 2
    %v535 = vadd.f32 %v533, %v534
    %v536 = vrot.slane %v535, 1
    %v537 = vadd.f32 %v535, %v536
    %v538 = vmul.f32 %v537, 0.0625
    %v539 = vmul.f32 %v525, %v525
    %v540 = vmul.f32 %v526, %v526
    %v541 = vadd.f32 %v539, %v540
    %v542 = vrot.slane %v541, 4
    %v543 = vadd.f32 %v541, %v542
    %v544 = vrot.slane %v543, 2
    %v545 = vadd.f32 %v543, %v544
    %v546 = vrot.slane %v545, 1
    %v547 = vadd.f32 %v545, %v546
    %v548 = vmul.f32 %v547, 0.0625
    %v549 = vmul.f32 %v538, %v538
    %v550 = vsub.f32 %v548, %v549
    %v551 = vmax.f32 %v550, 0.0
    %v552 = vadd.f32 %v551, 1e-05
    %v553 = vrsqrt.pop %v552
    %v554 = vmul.f32 %v528, %v553
    %v555 = vmul.f32 %v538, %v554
    %v556 = vsub.f32 %v530, %v555
    %v558 = vlaneseq
    %v559 = vshrl.u32 %v558, 7
    %v560 = vsub.s32 0, %v559
    %v561 = vrot.slane %v554, %v560
    %v563 = vmul.f32 %v525, %v561
    %v564 = vmul.f32 %v526, %v561
    %v566 = vlaneseq
    %v567 = vshrl.u32 %v566, 7
    %v568 = vsub.s32 0, %v567
    %v569 = vrot.slane %v556, %v568
    %v571 = vadd.f32 %v563, %v569
    %v572 = vadd.f32 %v564, %v569
    %v573 = vld [vmem:[#allocation11] sm:$0xff]
    %v574 = vld [vmem:[#allocation11 + $0x8] sm:$0xff]
    %v575 = vld [vmem:[#allocation11 + $0x10] sm:$0xff]
    %v576 = vld [vmem:[#allocation11 + $0x18] sm:$0xff]
    %v577 = vld [vmem:[#allocation11 + $0x20] sm:$0xff]
    %v578 = vld [vmem:[#allocation11 + $0x28] sm:$0xff]
    %v579 = vld [vmem:[#allocation11 + $0x30] sm:$0xff]
    %v580 = vld [vmem:[#allocation11 + $0x38] sm:$0xff]
    %v581 = vld [vmem:[#allocation11 + $0x40] sm:$0xff]
    %v582 = vld [vmem:[#allocation11 + $0x48] sm:$0xff]
    %v583 = vld [vmem:[#allocation11 + $0x50] sm:$0xff]
    %v584 = vld [vmem:[#allocation11 + $0x58] sm:$0xff]
    %v585 = vld [vmem:[#allocation11 + $0x60] sm:$0xff]
    %v586 = vld [vmem:[#allocation11 + $0x68] sm:$0xff]
    %v587 = vld [vmem:[#allocation11 + $0x70] sm:$0xff]
    %v588 = vld [vmem:[#allocation11 + $0x78] sm:$0xff]
    %589 = vmatprep.subr.mxu0 0.0
    %590 = vmatpush1.msra.mxu0 %v588
    %591 = vmatprep.subr.mxu0 0.0
    %592 = vmatpush1.msra.mxu0 %v587
    %593 = vmatprep.subr.mxu0 0.0
    %594 = vmatpush1.msra.mxu0 %v586
    %595 = vmatprep.subr.mxu0 0.0
    %596 = vmatpush1.msra.mxu0 %v585
    %597 = vmatprep.subr.mxu0 0.0
    %598 = vmatpush1.msra.mxu0 %v584
    %599 = vmatprep.subr.mxu0 0.0
    %600 = vmatpush1.msra.mxu0 %v583
    %601 = vmatprep.subr.mxu0 0.0
    %602 = vmatpush1.msra.mxu0 %v582
    %603 = vmatprep.subr.mxu0 0.0
    %604 = vmatpush1.msra.mxu0 %v581
    %605 = vmatprep.subr.mxu0 0.0
    %606 = vmatpush1.msra.mxu0 %v580
    %607 = vmatprep.subr.mxu0 0.0
    %608 = vmatpush1.msra.mxu0 %v579
    %609 = vmatprep.subr.mxu0 0.0
    %610 = vmatpush1.msra.mxu0 %v578
    %611 = vmatprep.subr.mxu0 0.0
    %612 = vmatpush1.msra.mxu0 %v577
    %613 = vmatprep.subr.mxu0 0.0
    %614 = vmatpush1.msra.mxu0 %v576
    %615 = vmatprep.subr.mxu0 0.0
    %616 = vmatpush1.msra.mxu0 %v575
    %617 = vmatprep.subr.mxu0 0.0
    %618 = vmatpush1.msra.mxu0 %v574
    %619 = vmatprep.subr.mxu0 0.0
    %620 = vmatpush1.msra.mxu0 %v573
    %621 = vmatprep.subr.mxu0 0.0
    %622 = vmatpush2.msra.mxu0 0.0
    %623 = vmatprep.subr.mxu0 0.0
    %624 = vmatpush2.msra.mxu0 0.0
    %625 = vmatprep.subr.mxu0 0.0
    %626 = vmatpush2.msra.mxu0 0.0
    %627 = vmatprep.subr.mxu0 0.0
    %628 = vmatpush2.msra.mxu0 0.0
    %629 = vmatprep.subr.mxu0 0.0
    %630 = vmatpush2.msra.mxu0 0.0
    %631 = vmatprep.subr.mxu0 0.0
    %632 = vmatpush2.msra.mxu0 0.0
    %633 = vmatprep.subr.mxu0 0.0
    %634 = vmatpush2.msra.mxu0 0.0
    %635 = vmatprep.subr.mxu0 0.0
    %636 = vmatpush2.msra.mxu0 0.0
    %637 = vmatprep.subr.mxu0 0.0
    %638 = vmatpush2.msra.mxu0 0.0
    %639 = vmatprep.subr.mxu0 0.0
    %640 = vmatpush2.msra.mxu0 0.0
    %641 = vmatprep.subr.mxu0 0.0
    %642 = vmatpush2.msra.mxu0 0.0
    %643 = vmatprep.subr.mxu0 0.0
    %644 = vmatpush2.msra.mxu0 0.0
    %645 = vmatprep.subr.mxu0 0.0
    %646 = vmatpush2.msra.mxu0 0.0
    %647 = vmatprep.subr.mxu0 0.0
    %648 = vmatpush2.msra.mxu0 0.0
    %649 = vmatprep.subr.mxu0 0.0
    %650 = vmatpush2.msra.mxu0 0.0
    %651 = vmatprep.subr.mxu0 0.0
    %652 = vmatpush2.msra.mxu0 0.0
    %653 = vmatprep.mubr.f32.mxu0 0.0
    %654 = vmatmul.mubr.f32.gmra.mxu0 %v571
    %v655 = vpop.f32.mrf.mxu0
    %v656 = vadd.f32 0.0, %v655
    %v657 = vpop.f32.mrf.mxu0
    %658 = vmatprep.mubr.f32.mxu0 0.0
    %659 = vmatmul.mubr.f32.gmra.mxu0 %v572
    %v660 = vpop.f32.mrf.mxu0
    %v661 = vadd.f32 0.0, %v660
    %v662 = vpop.f32.mrf.mxu0
    %663 = vdwg.mxu0
    %v664 = vld [vmem:[%s11] sm:$0x1]
    %v665 = vld [vmem:[%s12] sm:$0x1]
    %v666 = vadd.f32 %v656, %v661
    %v667 = vrot.slane %v666, 4
    %v668 = vadd.f32 %v666, %v667
    %v669 = vrot.slane %v668, 2
    %v670 = vadd.f32 %v668, %v669
    %v671 = vrot.slane %v670, 1
    %v672 = vadd.f32 %v670, %v671
    %v673 = vmul.f32 %v672, 0.0625
    %v674 = vmul.f32 %v656, %v656
    %v675 = vmul.f32 %v661, %v661
    %v676 = vadd.f32 %v674, %v675
    %v677 = vrot.slane %v676, 4
    %v678 = vadd.f32 %v676, %v677
    %v679 = vrot.slane %v678, 2
    %v680 = vadd.f32 %v678, %v679
    %v681 = vrot.slane %v680, 1
    %v682 = vadd.f32 %v680, %v681
    %v683 = vmul.f32 %v682, 0.0625
    %v684 = vmul.f32 %v673, %v673
    %v685 = vsub.f32 %v683, %v684
    %v686 = vmax.f32 %v685, 0.0
    %v687 = vadd.f32 %v686, 1e-05
    %v688 = vrsqrt.pop %v687
    %v689 = vmul.f32 %v664, %v688
    %v690 = vmul.f32 %v673, %v689
    %v691 = vsub.f32 %v665, %v690
    %v693 = vlaneseq
    %v694 = vshrl.u32 %v693, 7
    %v695 = vsub.s32 0, %v694
    %v696 = vrot.slane %v689, %v695
    %v698 = vmul.f32 %v656, %v696
    %v699 = vmul.f32 %v661, %v696
    %v701 = vlaneseq
    %v702 = vshrl.u32 %v701, 7
    %v703 = vsub.s32 0, %v702
    %v704 = vrot.slane %v691, %v703
    %v706 = vadd.f32 %v698, %v704
    %v707 = vadd.f32 %v699, %v704
    %708 = vst [vmem:[#allocation13] sm:$0xff] %v706
    %709 = vst [vmem:[#allocation13 + $0x8] sm:$0xff] %v707
    // Predicated region
    $region78: #{tpu_custom_call.1} parent=1 // pred_check
      _
    $region79: #{tpu_custom_call.1} parent=1 // pred_check_branch
      %711 = sbr.rel (0) target = $region81
    $region80: #{tpu_custom_call.1} parent=1 // pred_region
      %s713 = ssub.s32 256, 256
      %714 = vsyncadd [#allocation4], %s713
      %s715 = sshll.u32 [#allocation13], 4
      %s716 = int_to_ptr.vmem [resolvable:$true] %s715
      %721 = dma.vmem_to_hbm [thread:$0]  %s716, 256, %s13, [#allocation4], 128, 128, 8
    $region81: #{tpu_custom_call.1} parent=1 // pred_fallthru
      _
    // Predicated region
    $region82: #{tpu_custom_call.1} parent=1 // pred_check
      _
    $region83: #{tpu_custom_call.1} parent=1 // pred_check_branch
      %723 = sbr.rel (0) target = $region85
    $region84: #{tpu_custom_call.1} parent=1 // pred_region
      %724 = dma.done [#allocation4], 256
    $region85: #{tpu_custom_call.1} parent=1 // pred_fallthru
      _
    %725 = vsyncpa [#allocation3], 1
    %726 = vsyncpa [#allocation6], 1
    %727 = vsyncpa [#allocation9], 1
    %728 = vsyncpa [#allocation12], 1
    %729 = vsyncpa [#allocation4], 1

</llo_original>
